<compile_context>
chip_gen: v7x
topology: tpu7x:2x2x1
jax: 0.10.0
libtpu: 0.0.40
codegen_flags: <defaults>
</compile_context>

<pallas_src>
import functools
import math
from typing import NamedTuple

import jax
import jax.numpy as jnp
from jax.experimental import pallas as pl
from jax.experimental.pallas import tpu as pltpu


def _round_up(n, m):
    return ((n + m - 1) // m) * m


def _cdiv(a, b):
    return (a + b - 1) // b


# ----------------------------------------------------------------------------
# Kernel body: x @ W1 -> +b1 -> ReLU -> @ W2 -> +b2 -> ReLU -> @ W3 -> +b3
# bf16 MXU operands, f32 accumulation, bias/ReLU in f32, bf16 between layers.
# ----------------------------------------------------------------------------
def mlp_kernel(x_ref, w1_ref, b1_ref, w2_ref, b2_ref, w3_ref, b3_ref, o_ref):
    x = x_ref[...]                                                   # bf16 [tb, Din_p]
    h = jnp.dot(x, w1_ref[...], preferred_element_type=jnp.float32)
    h = jnp.maximum(h + b1_ref[...], 0.0).astype(jnp.bfloat16)
    h = jnp.dot(h, w2_ref[...], preferred_element_type=jnp.float32)
    h = jnp.maximum(h + b2_ref[...], 0.0).astype(jnp.bfloat16)
    out = jnp.dot(h, w3_ref[...], preferred_element_type=jnp.float32) + b3_ref[...]
    o_ref[...] = out.astype(o_ref.dtype)


# ----------------------------------------------------------------------------
# One-time parameter prep (do NOT redo per forward call).
# ----------------------------------------------------------------------------
def prepare_params(w1, b1, w2, b2, w3, b3):
    """PyTorch-convention [out, in] weights -> [in, out], every dim zero-padded
    to a multiple of 128 (lane-dense), weights bf16, biases f32."""
    D_in, H, D_out = int(w1.shape[1]), int(w1.shape[0]), int(w3.shape[0])
    D_in_p, H_p, D_out_p = (_round_up(d, 128) for d in (D_in, H, D_out))

    def pad2(a, rows, cols):
        return jnp.pad(a, ((0, rows - a.shape[0]), (0, cols - a.shape[1])))

    w1t = pad2(jnp.asarray(w1, jnp.float32).T, D_in_p, H_p).astype(jnp.bfloat16)
    w2t = pad2(jnp.asarray(w2, jnp.float32).T, H_p, H_p).astype(jnp.bfloat16)
    w3t = pad2(jnp.asarray(w3, jnp.float32).T, H_p, D_out_p).astype(jnp.bfloat16)
    b1r = pad2(jnp.asarray(b1, jnp.float32).reshape(1, -1), 1, H_p)
    b2r = pad2(jnp.asarray(b2, jnp.float32).reshape(1, -1), 1, H_p)
    b3r = pad2(jnp.asarray(b3, jnp.float32).reshape(1, -1), 1, D_out_p)
    return (w1t, b1r, w2t, b2r, w3t, b3r), (D_in, H, D_out, D_in_p, H_p, D_out_p)


# ----------------------------------------------------------------------------
# Hardware / capability probes (cached, run once, outside any jit trace).
# ----------------------------------------------------------------------------
@functools.lru_cache(maxsize=None)
def _tpu_config():
    """Returns (mxu_rows, vmem_cap_bytes, num_tensorcores)."""
    kind = ""
    try:
        kind = jax.devices()[0].device_kind.lower()
    except Exception:
        pass
    physical = None
    try:  # optional query; table fallback below is authoritative if it fails
        physical = getattr(pltpu.get_tpu_info(), "vmem_capacity_bytes", None)
    except Exception:
        physical = None

    if "v7" in kind:
        mxu_rows, cores = 256, 2
        physical = physical or (64 << 20)
    elif "v6" in kind:
        mxu_rows, cores = 256, 1
        physical = physical or (128 << 20)
    elif "v5 lite" in kind or "v5lite" in kind or "v5e" in kind:
        mxu_rows, cores = 128, 1
        physical = physical or (128 << 20)
    else:  # unknown / older part: conservative defaults
        mxu_rows, cores = 128, 1
        physical = physical or (64 << 20)

    # Leave headroom for Mosaic internal scratch / spill.
    if physical <= (64 << 20):
        cap = physical - (8 << 20)                      # v7x: ~56 MiB
    else:
        cap = min(physical - (24 << 20), 110 << 20)     # v5e/v6e: ~104 MiB
    return mxu_rows, int(cap), cores


@functools.lru_cache(maxsize=None)
def _buffered_weights_supported():
    """One-time probe: does this jax accept pipeline_mode=pl.Buffered(1) on a
    TPU input BlockSpec? Probed with a tiny dummy kernel so the real
    pallas_call never needs a broad try/except."""
    if not hasattr(pl, "Buffered"):
        return False
    try:
        spec = pl.BlockSpec((8, 128), lambda i: (0, 0),
                            pipeline_mode=pl.Buffered(1))
    except TypeError:
        return False
    try:
        def _copy(x_ref, o_ref):
            o_ref[...] = x_ref[...]
        probe = pl.pallas_call(
            _copy,
            out_shape=jax.ShapeDtypeStruct((8, 128), jnp.float32),
            grid=(1,),
            in_specs=[spec],
            out_specs=pl.BlockSpec((8, 128), lambda i: (0, 0)),
        )
        jax.jit(probe).lower(
            jax.ShapeDtypeStruct((8, 128), jnp.float32)).compile()
        return True
    except Exception:
        # Probe-only failure => just don't use single-buffered weights.
        return False


# ----------------------------------------------------------------------------
# Host-side tiling / config resolution (plain Python, cached per shape).
# ----------------------------------------------------------------------------
class _Config(NamedTuple):
    batch_tile: int
    num_tiles: int
    b_pad: int
    parallel: bool
    use_buffered: bool
    vmem_limit: int


def _choose_batch_tile(B, mxu_rows, cores, vmem_cap, fixed_bytes,
                       D_in_p, H_p, D_out_p):
    """Largest MXU-row-aligned tile that fits VMEM and still leaves enough grid
    steps to pipeline (>=4 steps per TC on multi-core parts when B allows).
    Never below one MXU row block, never padded past one partial tile."""
    def per_tile_bytes(t):
        return (2 * 2 * t * D_in_p        # x bf16, double-buffered
                + 2 * 2 * t * D_out_p     # out bf16, double-buffered
                + 2 * 4 * t * H_p)        # f32 activation headroom

    max_tile = mxu_rows
    t = mxu_rows
    while t <= 2048 and fixed_bytes + per_tile_bytes(t) <= vmem_cap * 0.8:
        max_tile = t
        t += mxu_rows

    if B <= mxu_rows:
        return mxu_rows

    target_steps = 4 * cores if cores > 1 else 2
    best = mxu_rows                        # most steps possible if target unmet
    t = 2 * mxu_rows
    while t <= max_tile:
        if _cdiv(B, t) >= target_steps:
            best = t
        t += mxu_rows
    return best


@functools.lru_cache(maxsize=None)
def _resolve_config(B, dims, batch_tile):
    D_in, H, D_out, D_in_p, H_p, D_out_p = dims
    mxu_rows, vmem_cap, cores = _tpu_config()
    use_buffered = _buffered_weights_supported()

    weight_bytes = 2 * (D_in_p * H_p + H_p * H_p + H_p * D_out_p)   # bf16
    bias_bytes = 4 * (2 * H_p + D_out_p)                            # f32
    wbuf = 1 if use_buffered else 2
    fixed_bytes = wbuf * (weight_bytes + bias_bytes)

    if batch_tile is None:
        batch_tile = _choose_batch_tile(B, mxu_rows, cores, vmem_cap,
                                        fixed_bytes, D_in_p, H_p, D_out_p)
    num_tiles = _cdiv(B, batch_tile)
    b_pad = num_tiles * batch_tile

    # Megacore-shard the batch axis only when there are multiple tiles AND the
    # kernel is not weight-DMA bound (each TC has private VMEM, so "parallel"
    # makes both v7x cores re-stream the full weights from HBM).
    weight_bound = (2 * b_pad) < 600        # FLOPs per weight byte vs HBM roofline
    parallel = (num_tiles > 1) and not (cores > 1 and weight_bound)

    vmem_needed = (fixed_bytes
                   + 2 * 2 * batch_tile * D_in_p
                   + 2 * 2 * batch_tile * D_out_p
                   + 2 * 4 * batch_tile * H_p)
    vmem_limit = int(min(vmem_cap,
                         max(min(32 << 20, vmem_cap),
                             int(vmem_needed * 1.25) + (4 << 20))))
    return _Config(batch_tile=int(batch_tile), num_tiles=int(num_tiles),
                   b_pad=int(b_pad), parallel=bool(parallel),
                   use_buffered=bool(use_buffered), vmem_limit=vmem_limit)


# ----------------------------------------------------------------------------
# Forward pass. The padded/cast/slice plumbing is jitted so it fuses with the
# pallas_call instead of making extra HBM round-trips.
# ----------------------------------------------------------------------------
@functools.partial(jax.jit, static_argnames=("dims", "cfg"))
def _mlp_forward_padded(x, params, dims, cfg):
    w1t, b1r, w2t, b2r, w3t, b3r = params
    D_in, H, D_out, D_in_p, H_p, D_out_p = dims
    B = x.shape[0]

    x_pad = jnp.pad(x.astype(jnp.bfloat16),
                    ((0, cfg.b_pad - B), (0, D_in_p - D_in)))

    # Weights/biases are grid-invariant: single-buffer them when supported
    # (halves their VMEM residency).
    wk = dict(pipeline_mode=pl.Buffered(1)) if cfg.use_buffered else {}
    in_specs = [
        pl.BlockSpec((cfg.batch_tile, D_in_p), lambda i: (i, 0)),      # x tile
        pl.BlockSpec((D_in_p, H_p), lambda i: (0, 0), **wk),           # W1^T
        pl.BlockSpec((1, H_p), lambda i: (0, 0), **wk),                # b1
        pl.BlockSpec((H_p, H_p), lambda i: (0, 0), **wk),              # W2^T
        pl.BlockSpec((1, H_p), lambda i: (0, 0), **wk),                # b2
        pl.BlockSpec((H_p, D_out_p), lambda i: (0, 0), **wk),          # W3^T
        pl.BlockSpec((1, D_out_p), lambda i: (0, 0), **wk),            # b3
    ]

    flops = 2 * cfg.b_pad * (D_in_p * H_p + H_p * H_p + H_p * D_out_p)
    bytes_accessed = (
        2 * (D_in_p * H_p + H_p * H_p + H_p * D_out_p)   # bf16 weights
        + 4 * (2 * H_p + D_out_p)                        # f32 biases
        + 2 * cfg.b_pad * D_in_p                         # bf16 x
        + 2 * cfg.b_pad * D_out_p)                       # bf16 out

    out_pad = pl.pallas_call(
        mlp_kernel,
        out_shape=jax.ShapeDtypeStruct((cfg.b_pad, D_out_p), jnp.bfloat16),
        grid_spec=pltpu.PrefetchScalarGridSpec(
            num_scalar_prefetch=0,
            grid=(cfg.num_tiles,),
            in_specs=in_specs,
            out_specs=pl.BlockSpec((cfg.batch_tile, D_out_p), lambda i: (i, 0)),
        ),
        compiler_params=pltpu.CompilerParams(
            dimension_semantics=(("parallel",) if cfg.parallel
                                 else ("arbitrary",)),
            vmem_limit_bytes=cfg.vmem_limit,
        ),
        cost_estimate=pl.CostEstimate(
            flops=flops, transcendentals=0, bytes_accessed=bytes_accessed),
    )(x_pad, w1t, b1r, w2t, b2r, w3t, b3r)

    return out_pad[:B, :D_out].astype(x.dtype)


def mlp_forward(x, params, dims, *, batch_tile=None):
    """x: [B, D_in] (any float dtype); params/dims from prepare_params."""
    cfg = _resolve_config(int(x.shape[0]), dims, batch_tile)
    return _mlp_forward_padded(x, params, dims, cfg)


# ----------------------------------------------------------------------------
# Deterministic init mimicking nn.Linear.reset_parameters().
# ----------------------------------------------------------------------------
def init_linear(key, out_features, in_features, dtype=jnp.float32):
    kw, kb = jax.random.split(key)
    bound = 1.0 / math.sqrt(in_features)
    w = jax.random.uniform(kw, (out_features, in_features), dtype,
                           minval=-bound, maxval=bound)
    b = jax.random.uniform(kb, (out_features,), dtype,
                           minval=-bound, maxval=bound)
    return w, b


if __name__ == "__main__":
    # Small shapes consistent with the module: batch=8, input=32, hidden=32, output=16
    B, D_in, H, D_out = 8, 32, 32, 16

    key = jax.random.PRNGKey(0)
    k_x, k1, k2, k3 = jax.random.split(key, 4)

    x = jax.random.normal(k_x, (B, D_in), jnp.float32)
    w1, b1 = init_linear(k1, H, D_in)
    w2, b2 = init_linear(k2, H, H)
    w3, b3 = init_linear(k3, D_out, H)

    params, dims = prepare_params(w1, b1, w2, b2, w3, b3)   # one-time prep
    out = mlp_forward(x, params, dims)
    out = jax.block_until_ready(out)

    # Pure-JAX f32 reference (activation = ReLU); bf16 MXU operands => loose tol.
    def ref(x):
        h = jnp.maximum(x @ w1.T + b1, 0.0)
        h = jnp.maximum(h @ w2.T + b2, 0.0)
        return h @ w3.T + b3

    expected = ref(x)
    assert out.shape == (B, D_out)
    assert jnp.allclose(out, expected, atol=5e-2, rtol=5e-2), (
        float(jnp.max(jnp.abs(out - expected))))

    print("KERNEL_OK")
</pallas_src>

<mosaic_0001>
module attributes {stable_mosaic.version = 11 : i64} {
  func.func @mlp_kernel(%arg0: i32, %arg1: memref<128x128xbf16, #tpu.memory_space<vmem>>, %arg2: memref<128x128xbf16, #tpu.memory_space<vmem>>, %arg3: memref<1x128xf32, #tpu.memory_space<vmem>>, %arg4: memref<128x128xbf16, #tpu.memory_space<vmem>>, %arg5: memref<1x128xf32, #tpu.memory_space<vmem>>, %arg6: memref<128x128xbf16, #tpu.memory_space<vmem>>, %arg7: memref<1x128xf32, #tpu.memory_space<vmem>>, %arg8: memref<128x128xbf16, #tpu.memory_space<vmem>>) attributes {dimension_semantics = [#tpu.dimension_semantics<arbitrary>], iteration_bounds = array<i64: 1>, scalar_prefetch = 0 : i64, scratch_operands = 0 : i64, tpu.core_type = #tpu.core_type<tc>, window_params = [{transform_indices = @transform_0, window_bounds = array<i64: 128, 128>}, {pipeline_mode = #tpu.pipeline_mode<synchronous>, transform_indices = @transform_1, window_bounds = array<i64: 128, 128>}, {pipeline_mode = #tpu.pipeline_mode<synchronous>, transform_indices = @transform_2, window_bounds = array<i64: 1, 128>}, {pipeline_mode = #tpu.pipeline_mode<synchronous>, transform_indices = @transform_3, window_bounds = array<i64: 128, 128>}, {pipeline_mode = #tpu.pipeline_mode<synchronous>, transform_indices = @transform_4, window_bounds = array<i64: 1, 128>}, {pipeline_mode = #tpu.pipeline_mode<synchronous>, transform_indices = @transform_5, window_bounds = array<i64: 128, 128>}, {pipeline_mode = #tpu.pipeline_mode<synchronous>, transform_indices = @transform_6, window_bounds = array<i64: 1, 128>}, {transform_indices = @transform_7, window_bounds = array<i64: 128, 128>}]} {
    %c0 = arith.constant 0 : index
    %c0_0 = arith.constant 0 : index
    %0 = vector.load %arg1[%c0, %c0_0] : memref<128x128xbf16, #tpu.memory_space<vmem>>, vector<128x128xbf16>
    %c0_1 = arith.constant 0 : index
    %c0_2 = arith.constant 0 : index
    %1 = vector.load %arg2[%c0_1, %c0_2] : memref<128x128xbf16, #tpu.memory_space<vmem>>, vector<128x128xbf16>
    %cst = arith.constant dense<0.000000e+00> : vector<128x128xf32>
    %2 = tpu.matmul %0, %1, %cst {dimension_numbers = #tpu.dot_dimension_numbers<[1], [0], [0], [1], [0, 0, 1, 1], [], []>} : vector<128x128xbf16>, vector<128x128xbf16>, vector<128x128xf32> -> vector<128x128xf32>
    %c0_3 = arith.constant 0 : index
    %c0_4 = arith.constant 0 : index
    %3 = vector.load %arg3[%c0_3, %c0_4] : memref<1x128xf32, #tpu.memory_space<vmem>>, vector<1x128xf32>
    %4 = vector.broadcast %3 : vector<1x128xf32> to vector<128x128xf32>
    %5 = arith.addf %2, %4 : vector<128x128xf32>
    %cst_5 = arith.constant 0.000000e+00 : f32
    %6 = vector.broadcast %cst_5 : f32 to vector<128x128xf32>
    %7 = arith.maximumf %5, %6 : vector<128x128xf32>
    %8 = arith.truncf %7 : vector<128x128xf32> to vector<128x128xbf16>
    %c0_6 = arith.constant 0 : index
    %c0_7 = arith.constant 0 : index
    %9 = vector.load %arg4[%c0_6, %c0_7] : memref<128x128xbf16, #tpu.memory_space<vmem>>, vector<128x128xbf16>
    %cst_8 = arith.constant dense<0.000000e+00> : vector<128x128xf32>
    %10 = tpu.matmul %8, %9, %cst_8 {dimension_numbers = #tpu.dot_dimension_numbers<[1], [0], [0], [1], [0, 0, 1, 1], [], []>} : vector<128x128xbf16>, vector<128x128xbf16>, vector<128x128xf32> -> vector<128x128xf32>
    %c0_9 = arith.constant 0 : index
    %c0_10 = arith.constant 0 : index
    %11 = vector.load %arg5[%c0_9, %c0_10] : memref<1x128xf32, #tpu.memory_space<vmem>>, vector<1x128xf32>
    %12 = vector.broadcast %11 : vector<1x128xf32> to vector<128x128xf32>
    %13 = arith.addf %10, %12 : vector<128x128xf32>
    %cst_11 = arith.constant 0.000000e+00 : f32
    %14 = vector.broadcast %cst_11 : f32 to vector<128x128xf32>
    %15 = arith.maximumf %13, %14 : vector<128x128xf32>
    %16 = arith.truncf %15 : vector<128x128xf32> to vector<128x128xbf16>
    %c0_12 = arith.constant 0 : index
    %c0_13 = arith.constant 0 : index
    %17 = vector.load %arg6[%c0_12, %c0_13] : memref<128x128xbf16, #tpu.memory_space<vmem>>, vector<128x128xbf16>
    %cst_14 = arith.constant dense<0.000000e+00> : vector<128x128xf32>
    %18 = tpu.matmul %16, %17, %cst_14 {dimension_numbers = #tpu.dot_dimension_numbers<[1], [0], [0], [1], [0, 0, 1, 1], [], []>} : vector<128x128xbf16>, vector<128x128xbf16>, vector<128x128xf32> -> vector<128x128xf32>
    %c0_15 = arith.constant 0 : index
    %c0_16 = arith.constant 0 : index
    %19 = vector.load %arg7[%c0_15, %c0_16] : memref<1x128xf32, #tpu.memory_space<vmem>>, vector<1x128xf32>
    %20 = vector.broadcast %19 : vector<1x128xf32> to vector<128x128xf32>
    %21 = arith.addf %18, %20 : vector<128x128xf32>
    %22 = arith.truncf %21 : vector<128x128xf32> to vector<128x128xbf16>
    %c0_17 = arith.constant 0 : index
    %c0_18 = arith.constant 0 : index
    %23 = vector.load %arg8[%c0_17, %c0_18] : memref<128x128xbf16, #tpu.memory_space<vmem>>, vector<128x128xbf16>
    tpu.vector_store %arg8[%c0_17, %c0_18], %22 {strides = array<i32>} : memref<128x128xbf16, #tpu.memory_space<vmem>>, vector<128x128xbf16>,
    return
  }
  func.func @transform_0(%arg0: i32) -> (i32, i32) {
    %c0_i32 = arith.constant 0 : i32
    %c0_i32_0 = arith.constant 0 : i32
    return %arg0, %c0_i32 : i32, i32
  }
  func.func @transform_1(%arg0: i32) -> (i32, i32) {
    %c0_i32 = arith.constant 0 : i32
    %c0_i32_0 = arith.constant 0 : i32
    %c0_i32_1 = arith.constant 0 : i32
    return %c0_i32, %c0_i32_0 : i32, i32
  }
  func.func @transform_2(%arg0: i32) -> (i32, i32) {
    %c0_i32 = arith.constant 0 : i32
    %c0_i32_0 = arith.constant 0 : i32
    %c0_i32_1 = arith.constant 0 : i32
    return %c0_i32, %c0_i32_0 : i32, i32
  }
  func.func @transform_3(%arg0: i32) -> (i32, i32) {
    %c0_i32 = arith.constant 0 : i32
    %c0_i32_0 = arith.constant 0 : i32
    %c0_i32_1 = arith.constant 0 : i32
    return %c0_i32, %c0_i32_0 : i32, i32
  }
  func.func @transform_4(%arg0: i32) -> (i32, i32) {
    %c0_i32 = arith.constant 0 : i32
    %c0_i32_0 = arith.constant 0 : i32
    %c0_i32_1 = arith.constant 0 : i32
    return %c0_i32, %c0_i32_0 : i32, i32
  }
  func.func @transform_5(%arg0: i32) -> (i32, i32) {
    %c0_i32 = arith.constant 0 : i32
    %c0_i32_0 = arith.constant 0 : i32
    %c0_i32_1 = arith.constant 0 : i32
    return %c0_i32, %c0_i32_0 : i32, i32
  }
  func.func @transform_6(%arg0: i32) -> (i32, i32) {
    %c0_i32 = arith.constant 0 : i32
    %c0_i32_0 = arith.constant 0 : i32
    %c0_i32_1 = arith.constant 0 : i32
    return %c0_i32, %c0_i32_0 : i32, i32
  }
  func.func @transform_7(%arg0: i32) -> (i32, i32) {
    %c0_i32 = arith.constant 0 : i32
    %c0_i32_0 = arith.constant 0 : i32
    return %arg0, %c0_i32 : i32, i32
  }
}

</mosaic_0001>

<llo_original>
// kernel: _mlp_forward_padded.1
$region0: #{_mlp_forward_padded.1}
  #allocation0 [shape = 'u32[]', space=smem, size = 0x4, offset = 0x4, fixed_abs, tag = 'smem constant byte address 0x4 - core index']
  #allocation1 [shape = 'u32[144,128]{1,0:T(1,128)}', space=vmem, size = 0x12000, scoped, tag = 'internal scratch']
  %s0 = inlined_call_operand.vmem [shape: bf16[128,128], index: 0, kind: input, shape index: {}]
  %s1 = inlined_call_operand.vmem [shape: bf16[128,128], index: 1, kind: input, shape index: {}]
  %s2 = inlined_call_operand.vmem [shape: f32[1,128], index: 2, kind: input, shape index: {}]
  %s3 = inlined_call_operand.hbm [shape: bf16[128,128], index: 3, kind: input, shape index: {}]
  %s4 = inlined_call_operand.vmem [shape: f32[1,128], index: 4, kind: input, shape index: {}]
  %s5 = inlined_call_operand.hbm [shape: bf16[128,128], index: 5, kind: input, shape index: {}]
  %s6 = inlined_call_operand.vmem [shape: f32[1,128], index: 6, kind: input, shape index: {}]
  %s7 = inlined_call_operand.vmem [shape: bf16[128,128], index: 7, kind: output, shape index: {}]
  %s8 = sld [smem:[#allocation0]]
  $region46: #{_mlp_forward_padded.1} parent=0
    _
  %s10 = ssub.s32 1, %s8
  %s11 = scalar_select 0, %s10, %s8
  $region1: #{_mlp_forward_padded.1} parent=0
    #allocation2 [shape = 'u8[32768]{0}', space=vmem, size = 0x8000, scoped, tag = 'input window, operand 3, single buffered']
    #allocation3 [shape = 's32[1]{0}', space=sflag, size = 0x4, scoped, tag = 'scoped memory for _mlp_forward_padded.1']
    #allocation4 [shape = 'u8[32768]{0}', space=vmem, size = 0x8000, scoped, tag = 'input window, operand 5, single buffered']
    #allocation5 [shape = 's32[1]{0}', space=sflag, size = 0x4, scoped, tag = 'scoped memory for _mlp_forward_padded.1']
    %12 = vsyncpa [#allocation3], 0
    %13 = vsyncpa [#allocation5], 0
    // Predicated region
    $region2: #{_mlp_forward_padded.1} parent=1 // pred_check
      _
    $region3: #{_mlp_forward_padded.1} parent=1 // pred_check_branch
      %15 = sbr.rel (0) target = $region5
    $region4: #{_mlp_forward_padded.1} parent=1 // pred_region
      _
    $region5: #{_mlp_forward_padded.1} parent=1 // pred_fallthru
      _
    // Predicated region
    $region6: #{_mlp_forward_padded.1} parent=1 // pred_check
      _
    $region7: #{_mlp_forward_padded.1} parent=1 // pred_check_branch
      %17 = sbr.rel (0) target = $region9
    $region8: #{_mlp_forward_padded.1} parent=1 // pred_region
      _
    $region9: #{_mlp_forward_padded.1} parent=1 // pred_fallthru
      _
    // Predicated region
    $region10: #{_mlp_forward_padded.1} parent=1 // pred_check
      _
    $region11: #{_mlp_forward_padded.1} parent=1 // pred_check_branch
      %19 = sbr.rel (0) target = $region13
    $region12: #{_mlp_forward_padded.1} parent=1 // pred_region
      _
    $region13: #{_mlp_forward_padded.1} parent=1 // pred_fallthru
      _
    // Predicated region
    $region14: #{_mlp_forward_padded.1} parent=1 // pred_check
      _
    $region15: #{_mlp_forward_padded.1} parent=1 // pred_check_branch
      %21 = sbr.rel (0) target = $region17
    $region16: #{_mlp_forward_padded.1} parent=1 // pred_region
      %s23 = ssub.s32 1024, 1024
      %24 = vsyncadd [#allocation3], %s23
      %s25 = sshll.u32 [#allocation2], 4
      %s26 = int_to_ptr.vmem [resolvable:$true] %s25
      %31 = dma.hbm_to_vmem [thread:$0]  %s3, 1024, %s26, [#allocation3], 64, 64, 4
    $region17: #{_mlp_forward_padded.1} parent=1 // pred_fallthru
      _
    // Predicated region
    $region18: #{_mlp_forward_padded.1} parent=1 // pred_check
      _
    $region19: #{_mlp_forward_padded.1} parent=1 // pred_check_branch
      %33 = sbr.rel (0) target = $region21
    $region20: #{_mlp_forward_padded.1} parent=1 // pred_region
      _
    $region21: #{_mlp_forward_padded.1} parent=1 // pred_fallthru
      _
    // Predicated region
    $region22: #{_mlp_forward_padded.1} parent=1 // pred_check
      _
    $region23: #{_mlp_forward_padded.1} parent=1 // pred_check_branch
      %35 = sbr.rel (0) target = $region25
    $region24: #{_mlp_forward_padded.1} parent=1 // pred_region
      %s37 = ssub.s32 1024, 1024
      %38 = vsyncadd [#allocation5], %s37
      %s39 = sshll.u32 [#allocation4], 4
      %s40 = int_to_ptr.vmem [resolvable:$true] %s39
      %45 = dma.hbm_to_vmem [thread:$0]  %s5, 1024, %s40, [#allocation5], 64, 64, 4
    $region25: #{_mlp_forward_padded.1} parent=1 // pred_fallthru
      _
    // Predicated region
    $region26: #{_mlp_forward_padded.1} parent=1 // pred_check
      _
    $region27: #{_mlp_forward_padded.1} parent=1 // pred_check_branch
      %47 = sbr.rel (0) target = $region29
    $region28: #{_mlp_forward_padded.1} parent=1 // pred_region
      _
    $region29: #{_mlp_forward_padded.1} parent=1 // pred_fallthru
      _
    // Predicated region
    $region30: #{_mlp_forward_padded.1} parent=1 // pred_check
      _
    $region31: #{_mlp_forward_padded.1} parent=1 // pred_check_branch
      %49 = sbr.rel (0) target = $region33
    $region32: #{_mlp_forward_padded.1} parent=1 // pred_region
      %50 = dma.done [#allocation3], 1024
    $region33: #{_mlp_forward_padded.1} parent=1 // pred_fallthru
      _
    // Predicated region
    $region34: #{_mlp_forward_padded.1} parent=1 // pred_check
      _
    $region35: #{_mlp_forward_padded.1} parent=1 // pred_check_branch
      %52 = sbr.rel (0) target = $region37
    $region36: #{_mlp_forward_padded.1} parent=1 // pred_region
      %53 = dma.done [#allocation5], 1024
    $region37: #{_mlp_forward_padded.1} parent=1 // pred_fallthru
      _
    %v55 = vld [vmem:[%s0] sm:$0xf]
    %v56 = vld [vmem:[%s0 + $0x4] sm:$0xf]
    %v57 = vld [vmem:[%s0 + $0x8] sm:$0xf]
    %v58 = vld [vmem:[%s0 + $0xc] sm:$0xf]
    %v59 = vld [vmem:[%s0 + $0x10] sm:$0xf]
    %v60 = vld [vmem:[%s0 + $0x14] sm:$0xf]
    %v61 = vld [vmem:[%s0 + $0x18] sm:$0xf]
    %v62 = vld [vmem:[%s0 + $0x1c] sm:$0xf]
    %v63 = vld [vmem:[%s0 + $0x20] sm:$0xf]
    %v64 = vld [vmem:[%s0 + $0x24] sm:$0xf]
    %v65 = vld [vmem:[%s0 + $0x28] sm:$0xf]
    %v66 = vld [vmem:[%s0 + $0x2c] sm:$0xf]
    %v67 = vld [vmem:[%s0 + $0x30] sm:$0xf]
    %v68 = vld [vmem:[%s0 + $0x34] sm:$0xf]
    %v69 = vld [vmem:[%s0 + $0x38] sm:$0xf]
    %v70 = vld [vmem:[%s0 + $0x3c] sm:$0xf]
    %v71 = vld [vmem:[%s1] sm:$0xf]
    %v72 = vld [vmem:[%s1 + $0x4] sm:$0xf]
    %v73 = vld [vmem:[%s1 + $0x8] sm:$0xf]
    %v74 = vld [vmem:[%s1 + $0xc] sm:$0xf]
    %v75 = vld [vmem:[%s1 + $0x10] sm:$0xf]
    %v76 = vld [vmem:[%s1 + $0x14] sm:$0xf]
    %v77 = vld [vmem:[%s1 + $0x18] sm:$0xf]
    %v78 = vld [vmem:[%s1 + $0x1c] sm:$0xf]
    %v79 = vld [vmem:[%s1 + $0x20] sm:$0xf]
    %v80 = vld [vmem:[%s1 + $0x24] sm:$0xf]
    %v81 = vld [vmem:[%s1 + $0x28] sm:$0xf]
    %v82 = vld [vmem:[%s1 + $0x2c] sm:$0xf]
    %v83 = vld [vmem:[%s1 + $0x30] sm:$0xf]
    %v84 = vld [vmem:[%s1 + $0x34] sm:$0xf]
    %v85 = vld [vmem:[%s1 + $0x38] sm:$0xf]
    %v86 = vld [vmem:[%s1 + $0x3c] sm:$0xf]
    %v87 = vld [vmem:[%s2] sm:$0x1]
    %v89 = vlaneseq
    %v90 = vshrl.u32 %v89, 7
    %v91 = vsub.s32 0, %v90
    %v92 = vrot.slane %v87, %v91
    %v110 = vunpack.c.l.b16 %v55
    %v111 = vunpack.c.l.b16 %v56
    %v112 = vunpack.c.l.b16 %v57
    %v113 = vunpack.c.l.b16 %v58
    %v114 = vunpack.c.l.b16 %v59
    %v115 = vunpack.c.l.b16 %v60
    %v116 = vunpack.c.l.b16 %v61
    %v117 = vunpack.c.l.b16 %v62
    %v118 = vunpack.c.l.b16 %v63
    %v119 = vunpack.c.l.b16 %v64
    %v120 = vunpack.c.l.b16 %v65
    %v121 = vunpack.c.l.b16 %v66
    %v122 = vunpack.c.l.b16 %v67
    %v123 = vunpack.c.l.b16 %v68
    %v124 = vunpack.c.l.b16 %v69
    %v125 = vunpack.c.l.b16 %v70
    %v126 = vpack.c.b16 %v111, %v110
    %v127 = vpack.c.b16 %v113, %v112
    %v128 = vpack.c.b16 %v115, %v114
    %v129 = vpack.c.b16 %v117, %v116
    %v130 = vpack.c.b16 %v119, %v118
    %v131 = vpack.c.b16 %v121, %v120
    %v132 = vpack.c.b16 %v123, %v122
    %v133 = vpack.c.b16 %v125, %v124
    %v158 = vunpack.c.l.b16 %v71
    %v159 = vunpack.c.l.b16 %v72
    %v160 = vunpack.c.l.b16 %v73
    %v161 = vunpack.c.l.b16 %v74
    %v162 = vunpack.c.l.b16 %v75
    %v163 = vunpack.c.l.b16 %v76
    %v164 = vunpack.c.l.b16 %v77
    %v165 = vunpack.c.l.b16 %v78
    %v166 = vunpack.c.l.b16 %v79
    %v167 = vunpack.c.l.b16 %v80
    %v168 = vunpack.c.l.b16 %v81
    %v169 = vunpack.c.l.b16 %v82
    %v170 = vunpack.c.l.b16 %v83
    %v171 = vunpack.c.l.b16 %v84
    %v172 = vunpack.c.l.b16 %v85
    %v173 = vunpack.c.l.b16 %v86
    %v174 = vpack.c.b16 %v159, %v158
    %v175 = vpack.c.b16 %v161, %v160
    %v176 = vpack.c.b16 %v163, %v162
    %v177 = vpack.c.b16 %v165, %v164
    %v178 = vpack.c.b16 %v167, %v166
    %v179 = vpack.c.b16 %v169, %v168
    %v180 = vpack.c.b16 %v171, %v170
    %v181 = vpack.c.b16 %v173, %v172
    %190 = vmatprep.subr.bf16.mxu0 0
    %191 = vmatpush1.bf16.msra.mxu0 %v174
    %192 = vmatprep.subr.bf16.mxu0 0
    %193 = vmatpush1.bf16.msra.mxu0 %v175
    %194 = vmatprep.subr.bf16.mxu0 0
    %195 = vmatpush1.bf16.msra.mxu0 %v176
    %196 = vmatprep.subr.bf16.mxu0 0
    %197 = vmatpush1.bf16.msra.mxu0 %v177
    %198 = vmatprep.subr.bf16.mxu0 0
    %199 = vmatpush1.bf16.msra.mxu0 %v178
    %200 = vmatprep.subr.bf16.mxu0 0
    %201 = vmatpush1.bf16.msra.mxu0 %v179
    %202 = vmatprep.subr.bf16.mxu0 0
    %203 = vmatpush1.bf16.msra.mxu0 %v180
    %204 = vmatprep.subr.bf16.mxu0 0
    %205 = vmatpush1.bf16.msra.mxu0 %v181
    %206 = vmatprep.subr.bf16.mxu0 0
    %207 = vmatpush1.bf16.msra.mxu0 0
    %208 = vmatprep.subr.bf16.mxu0 0
    %209 = vmatpush1.bf16.msra.mxu0 0
    %210 = vmatprep.subr.bf16.mxu0 0
    %211 = vmatpush1.bf16.msra.mxu0 0
    %212 = vmatprep.subr.bf16.mxu0 0
    %213 = vmatpush1.bf16.msra.mxu0 0
    %214 = vmatprep.subr.bf16.mxu0 0
    %215 = vmatpush1.bf16.msra.mxu0 0
    %216 = vmatprep.subr.bf16.mxu0 0
    %217 = vmatpush1.bf16.msra.mxu0 0
    %218 = vmatprep.subr.bf16.mxu0 0
    %219 = vmatpush1.bf16.msra.mxu0 0
    %220 = vmatprep.subr.bf16.mxu0 0
    %221 = vmatpush1.bf16.msra.mxu0 0
    %222 = vmatprep.mubr.bf16.mxu0 0
    %223 = vmatmul.mubr.bf16.gmra.mrb[0].mxu0 %v126
    %v224 = vpop.f32.mrb[0].mxu0
    %v225 = vadd.f32 %v92, %v224
    %v226 = vpop.f32.mrb[0].mxu0
    %v227 = vpop.f32.mrb[0].mxu0
    %v228 = vadd.f32 %v92, %v227
    %v229 = vpop.f32.mrb[0].mxu0
    %230 = vmatprep.mubr.bf16.mxu0 0
    %231 = vmatmul.mubr.bf16.gmra.mrb[0].mxu0 %v127
    %v232 = vpop.f32.mrb[0].mxu0
    %v233 = vadd.f32 %v92, %v232
    %v234 = vpop.f32.mrb[0].mxu0
    %v235 = vpop.f32.mrb[0].mxu0
    %v236 = vadd.f32 %v92, %v235
    %v237 = vpop.f32.mrb[0].mxu0
    %238 = vmatprep.mubr.bf16.mxu0 0
    %239 = vmatmul.mubr.bf16.gmra.mrb[0].mxu0 %v128
    %v240 = vpop.f32.mrb[0].mxu0
    %v241 = vadd.f32 %v92, %v240
    %v242 = vpop.f32.mrb[0].mxu0
    %v243 = vpop.f32.mrb[0].mxu0
    %v244 = vadd.f32 %v92, %v243
    %v245 = vpop.f32.mrb[0].mxu0
    %246 = vmatprep.mubr.bf16.mxu0 0
    %247 = vmatmul.mubr.bf16.gmra.mrb[0].mxu0 %v129
    %v248 = vpop.f32.mrb[0].mxu0
    %v249 = vadd.f32 %v92, %v248
    %v250 = vpop.f32.mrb[0].mxu0
    %v251 = vpop.f32.mrb[0].mxu0
    %v252 = vadd.f32 %v92, %v251
    %v253 = vpop.f32.mrb[0].mxu0
    %254 = vmatprep.mubr.bf16.mxu0 0
    %255 = vmatmul.mubr.bf16.gmra.mrb[0].mxu0 %v130
    %v256 = vpop.f32.mrb[0].mxu0
    %v257 = vadd.f32 %v92, %v256
    %v258 = vpop.f32.mrb[0].mxu0
    %v259 = vpop.f32.mrb[0].mxu0
    %v260 = vadd.f32 %v92, %v259
    %v261 = vpop.f32.mrb[0].mxu0
    %262 = vmatprep.mubr.bf16.mxu0 0
    %263 = vmatmul.mubr.bf16.gmra.mrb[0].mxu0 %v131
    %v264 = vpop.f32.mrb[0].mxu0
    %v265 = vadd.f32 %v92, %v264
    %v266 = vpop.f32.mrb[0].mxu0
    %v267 = vpop.f32.mrb[0].mxu0
    %v268 = vadd.f32 %v92, %v267
    %v269 = vpop.f32.mrb[0].mxu0
    %270 = vmatprep.mubr.bf16.mxu0 0
    %271 = vmatmul.mubr.bf16.gmra.mrb[0].mxu0 %v132
    %v272 = vpop.f32.mrb[0].mxu0
    %v273 = vadd.f32 %v92, %v272
    %v274 = vpop.f32.mrb[0].mxu0
    %v275 = vpop.f32.mrb[0].mxu0
    %v276 = vadd.f32 %v92, %v275
    %v277 = vpop.f32.mrb[0].mxu0
    %278 = vmatprep.mubr.bf16.mxu0 0
    %279 = vmatmul.mubr.bf16.gmra.mrb[0].mxu0 %v133
    %v280 = vpop.f32.mrb[0].mxu0
    %v281 = vadd.f32 %v92, %v280
    %v282 = vpop.f32.mrb[0].mxu0
    %v283 = vpop.f32.mrb[0].mxu0
    %v284 = vadd.f32 %v92, %v283
    %v285 = vpop.f32.mrb[0].mxu0
    %286 = vdwg.mxu0
    %v287 = vmax.f32 %v225, 0.0
    %v288 = vmax.f32 %v228, 0.0
    %v289 = vmax.f32 %v233, 0.0
    %v290 = vmax.f32 %v236, 0.0
    %v291 = vmax.f32 %v241, 0.0
    %v292 = vmax.f32 %v244, 0.0
    %v293 = vmax.f32 %v249, 0.0
    %v294 = vmax.f32 %v252, 0.0
    %v295 = vmax.f32 %v257, 0.0
    %v296 = vmax.f32 %v260, 0.0
    %v297 = vmax.f32 %v265, 0.0
    %v298 = vmax.f32 %v268, 0.0
    %v299 = vmax.f32 %v273, 0.0
    %v300 = vmax.f32 %v276, 0.0
    %v301 = vmax.f32 %v281, 0.0
    %v302 = vmax.f32 %v284, 0.0
    %v303 = vpack.c.bf16 %v288, %v287
    %v304 = vpack.c.bf16 %v290, %v289
    %v305 = vpack.c.bf16 %v292, %v291
    %v306 = vpack.c.bf16 %v294, %v293
    %v307 = vpack.c.bf16 %v296, %v295
    %v308 = vpack.c.bf16 %v298, %v297
    %v309 = vpack.c.bf16 %v300, %v299
    %v310 = vpack.c.bf16 %v302, %v301
    %v311 = vld [vmem:[#allocation2] sm:$0xf]
    %v312 = vld [vmem:[#allocation2 + $0x4] sm:$0xf]
    %v313 = vld [vmem:[#allocation2 + $0x8] sm:$0xf]
    %v314 = vld [vmem:[#allocation2 + $0xc] sm:$0xf]
    %v315 = vld [vmem:[#allocation2 + $0x10] sm:$0xf]
    %v316 = vld [vmem:[#allocation2 + $0x14] sm:$0xf]
    %v317 = vld [vmem:[#allocation2 + $0x18] sm:$0xf]
    %v318 = vld [vmem:[#allocation2 + $0x1c] sm:$0xf]
    %v319 = vld [vmem:[#allocation2 + $0x20] sm:$0xf]
    %v320 = vld [vmem:[#allocation2 + $0x24] sm:$0xf]
    %v321 = vld [vmem:[#allocation2 + $0x28] sm:$0xf]
    %v322 = vld [vmem:[#allocation2 + $0x2c] sm:$0xf]
    %v323 = vld [vmem:[#allocation2 + $0x30] sm:$0xf]
    %v324 = vld [vmem:[#allocation2 + $0x34] sm:$0xf]
    %v325 = vld [vmem:[#allocation2 + $0x38] sm:$0xf]
    %v326 = vld [vmem:[#allocation2 + $0x3c] sm:$0xf]
    %v327 = vld [vmem:[%s4] sm:$0x1]
    %v329 = vlaneseq
    %v330 = vshrl.u32 %v329, 7
    %v331 = vsub.s32 0, %v330
    %v332 = vrot.slane %v327, %v331
    %v350 = vunpack.c.l.b16 %v311
    %v351 = vunpack.c.l.b16 %v312
    %v352 = vunpack.c.l.b16 %v313
    %v353 = vunpack.c.l.b16 %v314
    %v354 = vunpack.c.l.b16 %v315
    %v355 = vunpack.c.l.b16 %v316
    %v356 = vunpack.c.l.b16 %v317
    %v357 = vunpack.c.l.b16 %v318
    %v358 = vunpack.c.l.b16 %v319
    %v359 = vunpack.c.l.b16 %v320
    %v360 = vunpack.c.l.b16 %v321
    %v361 = vunpack.c.l.b16 %v322
    %v362 = vunpack.c.l.b16 %v323
    %v363 = vunpack.c.l.b16 %v324
    %v364 = vunpack.c.l.b16 %v325
    %v365 = vunpack.c.l.b16 %v326
    %v366 = vpack.c.b16 %v351, %v350
    %v367 = vpack.c.b16 %v353, %v352
    %v368 = vpack.c.b16 %v355, %v354
    %v369 = vpack.c.b16 %v357, %v356
    %v370 = vpack.c.b16 %v359, %v358
    %v371 = vpack.c.b16 %v361, %v360
    %v372 = vpack.c.b16 %v363, %v362
    %v373 = vpack.c.b16 %v365, %v364
    %382 = vmatprep.subr.bf16.mxu0 0
    %383 = vmatpush1.bf16.msra.mxu0 %v366
    %384 = vmatprep.subr.bf16.mxu0 0
    %385 = vmatpush1.bf16.msra.mxu0 %v367
    %386 = vmatprep.subr.bf16.mxu0 0
    %387 = vmatpush1.bf16.msra.mxu0 %v368
    %388 = vmatprep.subr.bf16.mxu0 0
    %389 = vmatpush1.bf16.msra.mxu0 %v369
    %390 = vmatprep.subr.bf16.mxu0 0
    %391 = vmatpush1.bf16.msra.mxu0 %v370
    %392 = vmatprep.subr.bf16.mxu0 0
    %393 = vmatpush1.bf16.msra.mxu0 %v371
    %394 = vmatprep.subr.bf16.mxu0 0
    %395 = vmatpush1.bf16.msra.mxu0 %v372
    %396 = vmatprep.subr.bf16.mxu0 0
    %397 = vmatpush1.bf16.msra.mxu0 %v373
    %398 = vmatprep.subr.bf16.mxu0 0
    %399 = vmatpush1.bf16.msra.mxu0 0
    %400 = vmatprep.subr.bf16.mxu0 0
    %401 = vmatpush1.bf16.msra.mxu0 0
    %402 = vmatprep.subr.bf16.mxu0 0
    %403 = vmatpush1.bf16.msra.mxu0 0
    %404 = vmatprep.subr.bf16.mxu0 0
    %405 = vmatpush1.bf16.msra.mxu0 0
    %406 = vmatprep.subr.bf16.mxu0 0
    %407 = vmatpush1.bf16.msra.mxu0 0
    %408 = vmatprep.subr.bf16.mxu0 0
    %409 = vmatpush1.bf16.msra.mxu0 0
    %410 = vmatprep.subr.bf16.mxu0 0
    %411 = vmatpush1.bf16.msra.mxu0 0
    %412 = vmatprep.subr.bf16.mxu0 0
    %413 = vmatpush1.bf16.msra.mxu0 0
    %414 = vmatprep.mubr.bf16.mxu0 0
    %415 = vmatmul.mubr.bf16.gmra.mrb[0].mxu0 %v303
    %v416 = vpop.f32.mrb[0].mxu0
    %v417 = vadd.f32 %v332, %v416
    %v418 = vpop.f32.mrb[0].mxu0
    %v419 = vpop.f32.mrb[0].mxu0
    %v420 = vadd.f32 %v332, %v419
    %v421 = vpop.f32.mrb[0].mxu0
    %422 = vmatprep.mubr.bf16.mxu0 0
    %423 = vmatmul.mubr.bf16.gmra.mrb[0].mxu0 %v304
    %v424 = vpop.f32.mrb[0].mxu0
    %v425 = vadd.f32 %v332, %v424
    %v426 = vpop.f32.mrb[0].mxu0
    %v427 = vpop.f32.mrb[0].mxu0
    %v428 = vadd.f32 %v332, %v427
    %v429 = vpop.f32.mrb[0].mxu0
    %430 = vmatprep.mubr.bf16.mxu0 0
    %431 = vmatmul.mubr.bf16.gmra.mrb[0].mxu0 %v305
    %v432 = vpop.f32.mrb[0].mxu0
    %v433 = vadd.f32 %v332, %v432
    %v434 = vpop.f32.mrb[0].mxu0
    %v435 = vpop.f32.mrb[0].mxu0
    %v436 = vadd.f32 %v332, %v435
    %v437 = vpop.f32.mrb[0].mxu0
    %438 = vmatprep.mubr.bf16.mxu0 0
    %439 = vmatmul.mubr.bf16.gmra.mrb[0].mxu0 %v306
    %v440 = vpop.f32.mrb[0].mxu0
    %v441 = vadd.f32 %v332, %v440
    %v442 = vpop.f32.mrb[0].mxu0
    %v443 = vpop.f32.mrb[0].mxu0
    %v444 = vadd.f32 %v332, %v443
    %v445 = vpop.f32.mrb[0].mxu0
    %446 = vmatprep.mubr.bf16.mxu0 0
    %447 = vmatmul.mubr.bf16.gmra.mrb[0].mxu0 %v307
    %v448 = vpop.f32.mrb[0].mxu0
    %v449 = vadd.f32 %v332, %v448
    %v450 = vpop.f32.mrb[0].mxu0
    %v451 = vpop.f32.mrb[0].mxu0
    %v452 = vadd.f32 %v332, %v451
    %v453 = vpop.f32.mrb[0].mxu0
    %454 = vmatprep.mubr.bf16.mxu0 0
    %455 = vmatmul.mubr.bf16.gmra.mrb[0].mxu0 %v308
    %v456 = vpop.f32.mrb[0].mxu0
    %v457 = vadd.f32 %v332, %v456
    %v458 = vpop.f32.mrb[0].mxu0
    %v459 = vpop.f32.mrb[0].mxu0
    %v460 = vadd.f32 %v332, %v459
    %v461 = vpop.f32.mrb[0].mxu0
    %462 = vmatprep.mubr.bf16.mxu0 0
    %463 = vmatmul.mubr.bf16.gmra.mrb[0].mxu0 %v309
    %v464 = vpop.f32.mrb[0].mxu0
    %v465 = vadd.f32 %v332, %v464
    %v466 = vpop.f32.mrb[0].mxu0
    %v467 = vpop.f32.mrb[0].mxu0
    %v468 = vadd.f32 %v332, %v467
    %v469 = vpop.f32.mrb[0].mxu0
    %470 = vmatprep.mubr.bf16.mxu0 0
    %471 = vmatmul.mubr.bf16.gmra.mrb[0].mxu0 %v310
    %v472 = vpop.f32.mrb[0].mxu0
    %v473 = vadd.f32 %v332, %v472
    %v474 = vpop.f32.mrb[0].mxu0
    %v475 = vpop.f32.mrb[0].mxu0
    %v476 = vadd.f32 %v332, %v475
    %v477 = vpop.f32.mrb[0].mxu0
    %478 = vdwg.mxu0
    %v479 = vmax.f32 %v417, 0.0
    %v480 = vmax.f32 %v420, 0.0
    %v481 = vmax.f32 %v425, 0.0
    %v482 = vmax.f32 %v428, 0.0
    %v483 = vmax.f32 %v433, 0.0
    %v484 = vmax.f32 %v436, 0.0
    %v485 = vmax.f32 %v441, 0.0
    %v486 = vmax.f32 %v444, 0.0
    %v487 = vmax.f32 %v449, 0.0
    %v488 = vmax.f32 %v452, 0.0
    %v489 = vmax.f32 %v457, 0.0
    %v490 = vmax.f32 %v460, 0.0
    %v491 = vmax.f32 %v465, 0.0
    %v492 = vmax.f32 %v468, 0.0
    %v493 = vmax.f32 %v473, 0.0
    %v494 = vmax.f32 %v476, 0.0
    %v495 = vpack.c.bf16 %v480, %v479
    %v496 = vpack.c.bf16 %v482, %v481
    %v497 = vpack.c.bf16 %v484, %v483
    %v498 = vpack.c.bf16 %v486, %v485
    %v499 = vpack.c.bf16 %v488, %v487
    %v500 = vpack.c.bf16 %v490, %v489
    %v501 = vpack.c.bf16 %v492, %v491
    %v502 = vpack.c.bf16 %v494, %v493
    %v503 = vld [vmem:[#allocation4] sm:$0xf]
    %v504 = vld [vmem:[#allocation4 + $0x4] sm:$0xf]
    %v505 = vld [vmem:[#allocation4 + $0x8] sm:$0xf]
    %v506 = vld [vmem:[#allocation4 + $0xc] sm:$0xf]
    %v507 = vld [vmem:[#allocation4 + $0x10] sm:$0xf]
    %v508 = vld [vmem:[#allocation4 + $0x14] sm:$0xf]
    %v509 = vld [vmem:[#allocation4 + $0x18] sm:$0xf]
    %v510 = vld [vmem:[#allocation4 + $0x1c] sm:$0xf]
    %v511 = vld [vmem:[#allocation4 + $0x20] sm:$0xf]
    %v512 = vld [vmem:[#allocation4 + $0x24] sm:$0xf]
    %v513 = vld [vmem:[#allocation4 + $0x28] sm:$0xf]
    %v514 = vld [vmem:[#allocation4 + $0x2c] sm:$0xf]
    %v515 = vld [vmem:[#allocation4 + $0x30] sm:$0xf]
    %v516 = vld [vmem:[#allocation4 + $0x34] sm:$0xf]
    %v517 = vld [vmem:[#allocation4 + $0x38] sm:$0xf]
    %v518 = vld [vmem:[#allocation4 + $0x3c] sm:$0xf]
    %v519 = vld [vmem:[%s6] sm:$0x1]
    %v521 = vlaneseq
    %v522 = vshrl.u32 %v521, 7
    %v523 = vsub.s32 0, %v522
    %v524 = vrot.slane %v519, %v523
    %v542 = vunpack.c.l.b16 %v503
    %v543 = vunpack.c.l.b16 %v504
    %v544 = vunpack.c.l.b16 %v505
    %v545 = vunpack.c.l.b16 %v506
    %v546 = vunpack.c.l.b16 %v507
    %v547 = vunpack.c.l.b16 %v508
    %v548 = vunpack.c.l.b16 %v509
    %v549 = vunpack.c.l.b16 %v510
    %v550 = vunpack.c.l.b16 %v511
    %v551 = vunpack.c.l.b16 %v512
    %v552 = vunpack.c.l.b16 %v513
    %v553 = vunpack.c.l.b16 %v514
    %v554 = vunpack.c.l.b16 %v515
    %v555 = vunpack.c.l.b16 %v516
    %v556 = vunpack.c.l.b16 %v517
    %v557 = vunpack.c.l.b16 %v518
    %v558 = vpack.c.b16 %v543, %v542
    %v559 = vpack.c.b16 %v545, %v544
    %v560 = vpack.c.b16 %v547, %v546
    %v561 = vpack.c.b16 %v549, %v548
    %v562 = vpack.c.b16 %v551, %v550
    %v563 = vpack.c.b16 %v553, %v552
    %v564 = vpack.c.b16 %v555, %v554
    %v565 = vpack.c.b16 %v557, %v556
    %574 = vmatprep.subr.bf16.mxu0 0
    %575 = vmatpush1.bf16.msra.mxu0 %v558
    %576 = vmatprep.subr.bf16.mxu0 0
    %577 = vmatpush1.bf16.msra.mxu0 %v559
    %578 = vmatprep.subr.bf16.mxu0 0
    %579 = vmatpush1.bf16.msra.mxu0 %v560
    %580 = vmatprep.subr.bf16.mxu0 0
    %581 = vmatpush1.bf16.msra.mxu0 %v561
    %582 = vmatprep.subr.bf16.mxu0 0
    %583 = vmatpush1.bf16.msra.mxu0 %v562
    %584 = vmatprep.subr.bf16.mxu0 0
    %585 = vmatpush1.bf16.msra.mxu0 %v563
    %586 = vmatprep.subr.bf16.mxu0 0
    %587 = vmatpush1.bf16.msra.mxu0 %v564
    %588 = vmatprep.subr.bf16.mxu0 0
    %589 = vmatpush1.bf16.msra.mxu0 %v565
    %590 = vmatprep.subr.bf16.mxu0 0
    %591 = vmatpush1.bf16.msra.mxu0 0
    %592 = vmatprep.subr.bf16.mxu0 0
    %593 = vmatpush1.bf16.msra.mxu0 0
    %594 = vmatprep.subr.bf16.mxu0 0
    %595 = vmatpush1.bf16.msra.mxu0 0
    %596 = vmatprep.subr.bf16.mxu0 0
    %597 = vmatpush1.bf16.msra.mxu0 0
    %598 = vmatprep.subr.bf16.mxu0 0
    %599 = vmatpush1.bf16.msra.mxu0 0
    %600 = vmatprep.subr.bf16.mxu0 0
    %601 = vmatpush1.bf16.msra.mxu0 0
    %602 = vmatprep.subr.bf16.mxu0 0
    %603 = vmatpush1.bf16.msra.mxu0 0
    %604 = vmatprep.subr.bf16.mxu0 0
    %605 = vmatpush1.bf16.msra.mxu0 0
    %606 = vmatprep.mubr.bf16.mxu0 0
    %607 = vmatmul.mubr.bf16.gmra.mrb[0].mxu0 %v495
    %v608 = vpop.f32.mrb[0].mxu0
    %v609 = vadd.f32 %v524, %v608
    %v610 = vpop.f32.mrb[0].mxu0
    %v611 = vpop.f32.mrb[0].mxu0
    %v612 = vadd.f32 %v524, %v611
    %v613 = vpop.f32.mrb[0].mxu0
    %614 = vmatprep.mubr.bf16.mxu0 0
    %615 = vmatmul.mubr.bf16.gmra.mrb[0].mxu0 %v496
    %v616 = vpop.f32.mrb[0].mxu0
    %v617 = vadd.f32 %v524, %v616
    %v618 = vpop.f32.mrb[0].mxu0
    %v619 = vpop.f32.mrb[0].mxu0
    %v620 = vadd.f32 %v524, %v619
    %v621 = vpop.f32.mrb[0].mxu0
    %622 = vmatprep.mubr.bf16.mxu0 0
    %623 = vmatmul.mubr.bf16.gmra.mrb[0].mxu0 %v497
    %v624 = vpop.f32.mrb[0].mxu0
    %v625 = vadd.f32 %v524, %v624
    %v626 = vpop.f32.mrb[0].mxu0
    %v627 = vpop.f32.mrb[0].mxu0
    %v628 = vadd.f32 %v524, %v627
    %v629 = vpop.f32.mrb[0].mxu0
    %630 = vmatprep.mubr.bf16.mxu0 0
    %631 = vmatmul.mubr.bf16.gmra.mrb[0].mxu0 %v498
    %v632 = vpop.f32.mrb[0].mxu0
    %v633 = vadd.f32 %v524, %v632
    %v634 = vpop.f32.mrb[0].mxu0
    %v635 = vpop.f32.mrb[0].mxu0
    %v636 = vadd.f32 %v524, %v635
    %v637 = vpop.f32.mrb[0].mxu0
    %638 = vmatprep.mubr.bf16.mxu0 0
    %639 = vmatmul.mubr.bf16.gmra.mrb[0].mxu0 %v499
    %v640 = vpop.f32.mrb[0].mxu0
    %v641 = vadd.f32 %v524, %v640
    %v642 = vpop.f32.mrb[0].mxu0
    %v643 = vpop.f32.mrb[0].mxu0
    %v644 = vadd.f32 %v524, %v643
    %v645 = vpop.f32.mrb[0].mxu0
    %646 = vmatprep.mubr.bf16.mxu0 0
    %647 = vmatmul.mubr.bf16.gmra.mrb[0].mxu0 %v500
    %v648 = vpop.f32.mrb[0].mxu0
    %v649 = vadd.f32 %v524, %v648
    %v650 = vpop.f32.mrb[0].mxu0
    %v651 = vpop.f32.mrb[0].mxu0
    %v652 = vadd.f32 %v524, %v651
    %v653 = vpop.f32.mrb[0].mxu0
    %654 = vmatprep.mubr.bf16.mxu0 0
    %655 = vmatmul.mubr.bf16.gmra.mrb[0].mxu0 %v501
    %v656 = vpop.f32.mrb[0].mxu0
    %v657 = vadd.f32 %v524, %v656
    %v658 = vpop.f32.mrb[0].mxu0
    %v659 = vpop.f32.mrb[0].mxu0
    %v660 = vadd.f32 %v524, %v659
    %v661 = vpop.f32.mrb[0].mxu0
    %662 = vmatprep.mubr.bf16.mxu0 0
    %663 = vmatmul.mubr.bf16.gmra.mrb[0].mxu0 %v502
    %v664 = vpop.f32.mrb[0].mxu0
    %v665 = vadd.f32 %v524, %v664
    %v666 = vpop.f32.mrb[0].mxu0
    %v667 = vpop.f32.mrb[0].mxu0
    %v668 = vadd.f32 %v524, %v667
    %v669 = vpop.f32.mrb[0].mxu0
    %670 = vdwg.mxu0
    %v671 = vpack.c.bf16 %v612, %v609
    %v672 = vpack.c.bf16 %v620, %v617
    %v673 = vpack.c.bf16 %v628, %v625
    %v674 = vpack.c.bf16 %v636, %v633
    %v675 = vpack.c.bf16 %v644, %v641
    %v676 = vpack.c.bf16 %v652, %v649
    %v677 = vpack.c.bf16 %v660, %v657
    %v678 = vpack.c.bf16 %v668, %v665
    %v687 = vunpack.c.l.b16 %v671
    %v688 = vunpack.c.h.b16 %v671
    %v689 = vunpack.c.l.b16 %v672
    %v690 = vunpack.c.h.b16 %v672
    %v691 = vunpack.c.l.b16 %v673
    %v692 = vunpack.c.h.b16 %v673
    %v693 = vunpack.c.l.b16 %v674
    %v694 = vunpack.c.h.b16 %v674
    %v695 = vunpack.c.l.b16 %v675
    %v696 = vunpack.c.h.b16 %v675
    %v697 = vunpack.c.l.b16 %v676
    %v698 = vunpack.c.h.b16 %v676
    %v699 = vunpack.c.l.b16 %v677
    %v700 = vunpack.c.h.b16 %v677
    %v701 = vunpack.c.l.b16 %v678
    %v702 = vunpack.c.h.b16 %v678
    %v703 = vpack.c.b16 %v687, %v687
    %v704 = vpack.c.b16 %v688, %v688
    %v705 = vpack.c.b16 %v689, %v689
    %v706 = vpack.c.b16 %v690, %v690
    %v707 = vpack.c.b16 %v691, %v691
    %v708 = vpack.c.b16 %v692, %v692
    %v709 = vpack.c.b16 %v693, %v693
    %v710 = vpack.c.b16 %v694, %v694
    %v711 = vpack.c.b16 %v695, %v695
    %v712 = vpack.c.b16 %v696, %v696
    %v713 = vpack.c.b16 %v697, %v697
    %v714 = vpack.c.b16 %v698, %v698
    %v715 = vpack.c.b16 %v699, %v699
    %v716 = vpack.c.b16 %v700, %v700
    %v717 = vpack.c.b16 %v701, %v701
    %v718 = vpack.c.b16 %v702, %v702
    %735 = vst [vmem:[%s7] sm:$0xf] %v703
    %736 = vst [vmem:[%s7 + $0x4] sm:$0xf] %v704
    %737 = vst [vmem:[%s7 + $0x8] sm:$0xf] %v705
    %738 = vst [vmem:[%s7 + $0xc] sm:$0xf] %v706
    %739 = vst [vmem:[%s7 + $0x10] sm:$0xf] %v707
    %740 = vst [vmem:[%s7 + $0x14] sm:$0xf] %v708
    %741 = vst [vmem:[%s7 + $0x18] sm:$0xf] %v709
    %742 = vst [vmem:[%s7 + $0x1c] sm:$0xf] %v710
    %743 = vst [vmem:[%s7 + $0x20] sm:$0xf] %v711
    %744 = vst [vmem:[%s7 + $0x24] sm:$0xf] %v712
    %745 = vst [vmem:[%s7 + $0x28] sm:$0xf] %v713
    %746 = vst [vmem:[%s7 + $0x2c] sm:$0xf] %v714
    %747 = vst [vmem:[%s7 + $0x30] sm:$0xf] %v715
    %748 = vst [vmem:[%s7 + $0x34] sm:$0xf] %v716
    %749 = vst [vmem:[%s7 + $0x38] sm:$0xf] %v717
    %750 = vst [vmem:[%s7 + $0x3c] sm:$0xf] %v718
    // Predicated region
    $region38: #{_mlp_forward_padded.1} parent=1 // pred_check
      _
    $region39: #{_mlp_forward_padded.1} parent=1 // pred_check_branch
      %752 = sbr.rel (0) target = $region41
    $region40: #{_mlp_forward_padded.1} parent=1 // pred_region
      _
    $region41: #{_mlp_forward_padded.1} parent=1 // pred_fallthru
      _
    // Predicated region
    $region42: #{_mlp_forward_padded.1} parent=1 // pred_check
      _
    $region43: #{_mlp_forward_padded.1} parent=1 // pred_check_branch
      %754 = sbr.rel (0) target = $region45
    $region44: #{_mlp_forward_padded.1} parent=1 // pred_region
      _
    $region45: #{_mlp_forward_padded.1} parent=1 // pred_fallthru
      _
    %755 = vsyncpa [#allocation3], 1
    %756 = vsyncpa [#allocation5], 1

</llo_original>
